<compile_context>
chip_gen: v7x
topology: tpu7x:2x2x1
jax: 0.10.0
libtpu: 0.0.40
codegen_flags: <defaults>
</compile_context>

<pallas_src>
import functools
import math

import jax
import jax.numpy as jnp
from jax.experimental import pallas as pl
from jax.experimental.pallas import tpu as pltpu


def _round_up(n, m):
    return ((n + m - 1) // m) * m


def _pad2(a, rows, cols):
    return jnp.pad(a, ((0, rows - a.shape[0]), (0, cols - a.shape[1])))


# --------------------------------- kernel ---------------------------------

def vae_kernel(
    # per-batch-tile inputs
    x_ref, eps_ref,
    # encoder params (VMEM-resident, single-buffered)
    w_in_ref, b_in_ref,
    w_in2_ref, b_in2_ref,
    w_mv_ref, b_mv_ref,          # fused [mean | var] projection
    # decoder params
    w_h_ref, b_h_ref,
    w_h2_ref, b_h2_ref,
    w_out_ref, b_out_ref,
    # per-batch-tile outputs
    x_hat_ref, mean_ref, log_var_ref, z_ref,
):
    cd = w_in_ref.dtype                    # matmul operand dtype (f32 or bf16)
    latent_pad = mean_ref.shape[-1]

    def dense(a, w_ref, b_ref, *, relu):
        # MXU matmul in `cd`, f32 accumulation; bias add / ReLU stay f32.
        y = jnp.dot(a.astype(cd), w_ref[...],
                    preferred_element_type=jnp.float32) + b_ref[...]
        return jnp.maximum(y, 0.0) if relu else y

    x = x_ref[...]                         # already cast to `cd` in the wrapper

    # ---------------- Encoder ----------------
    h = dense(x, w_in_ref, b_in_ref, relu=True)      # FC_input  + ReLU
    h = dense(h, w_in2_ref, b_in2_ref, relu=True)    # FC_input2 + ReLU

    mv = dense(h, w_mv_ref, b_mv_ref, relu=False)    # fused FC_mean | FC_var
    mean = mv[:, :latent_pad]
    log_var = mv[:, latent_pad:]

    # ------------- Reparameterization (f32 epilogue) -------------
    # z = mean + exp(0.5 * log_var) * epsilon
    z = mean + jnp.exp(0.5 * log_var) * eps_ref[...].astype(jnp.float32)

    # ---------------- Decoder ----------------
    d = dense(z, w_h_ref, b_h_ref, relu=True)        # FC_hidden  + ReLU
    d = dense(d, w_h2_ref, b_h2_ref, relu=True)      # FC_hidden2 + ReLU
    x_hat = dense(d, w_out_ref, b_out_ref, relu=False)

    x_hat_ref[...] = x_hat.astype(x_hat_ref.dtype)
    mean_ref[...] = mean.astype(mean_ref.dtype)
    log_var_ref[...] = log_var.astype(log_var_ref.dtype)
    z_ref[...] = z.astype(z_ref.dtype)


# --------------------- one-time parameter preparation ---------------------

_PARAM_ORDER = ("w_in", "b_in", "w_in2", "b_in2", "w_mv", "b_mv",
                "w_h", "b_h", "w_h2", "b_h2", "w_out", "b_out")


def prepare_params(params, *, compute_dtype=jnp.float32):
    """Pad to 128-lane multiples, fuse FC_mean|FC_var, cast weights.

    Run ONCE at model-load time; the result is passed to vae_forward so no
    weight reshaping/casting happens on the per-call path.
    """
    input_dim, hidden_dim = params["w_in"].shape
    latent_dim = params["w_mean"].shape[1]
    output_dim = params["w_out"].shape[1]

    ip = _round_up(input_dim, 128)
    hp = _round_up(hidden_dim, 128)
    lp = _round_up(latent_dim, 128)
    op = _round_up(output_dim, 128)

    def w(a, r, c):
        return _pad2(a, r, c).astype(compute_dtype)

    pp = {
        "w_in": w(params["w_in"], ip, hp),   "b_in": _pad2(params["b_in"], 1, hp),
        "w_in2": w(params["w_in2"], hp, hp), "b_in2": _pad2(params["b_in2"], 1, hp),
        "w_mv": jnp.concatenate(
            [_pad2(params["w_mean"], hp, lp), _pad2(params["w_var"], hp, lp)],
            axis=1).astype(compute_dtype),
        "b_mv": jnp.concatenate(
            [_pad2(params["b_mean"], 1, lp), _pad2(params["b_var"], 1, lp)],
            axis=1),
        "w_h": w(params["w_h"], lp, hp),     "b_h": _pad2(params["b_h"], 1, hp),
        "w_h2": w(params["w_h2"], hp, hp),   "b_h2": _pad2(params["b_h2"], 1, hp),
        "w_out": w(params["w_out"], hp, op), "b_out": _pad2(params["b_out"], 1, op),
    }
    return jax.tree_util.tree_map(jnp.asarray, pp)


# ------------------------------- forward ----------------------------------

@functools.partial(jax.jit, static_argnames=("output_dim", "block_b"))
def vae_forward(x, eps, pp, *, output_dim, block_b=256):
    B, _ = x.shape
    latent_dim = eps.shape[1]
    cd = pp["w_in"].dtype

    input_pad = pp["w_in"].shape[0]
    hidden_pad = pp["w_in"].shape[1]
    latent_pad = pp["w_mv"].shape[1] // 2
    output_pad = pp["w_out"].shape[1]

    # Batch tiling. 256 rows fills the v6e/v7x 256-wide MXU; multiples of 8.
    tb = min(block_b, _round_up(B, 8))
    b_pad = _round_up(B, tb)
    # v7x has 2 TensorCores: prefer >= 2 parallel grid steps when splittable.
    if b_pad // tb < 2 and tb > 8:
        tb = _round_up(max(tb // 2, 8), 8)
        b_pad = _round_up(B, tb)
    grid = (b_pad // tb,)

    # Zero-padded rows/lanes stay inert through every layer (zero weights and
    # biases keep them zero; eps pad of 0 keeps z pad at 0) and are sliced off.
    x_p = _pad2(x, b_pad, input_pad).astype(cd)      # halves x DMA when bf16
    eps_p = _pad2(eps, b_pad, latent_pad)            # f32: used in f32 epilogue

    weights = tuple(pp[k] for k in _PARAM_ORDER)
    inputs = (x_p, eps_p) + weights

    def batch_spec(cols):
        return pl.BlockSpec((tb, cols), lambda i: (i, 0))

    def const_spec(a):
        # Weights never change across grid steps: single-buffer them so each
        # is fetched once and occupies VMEM only once.
        return pl.BlockSpec(a.shape, lambda i: (0, 0),
                            pipeline_mode=pl.Buffered(1))

    in_specs = [batch_spec(input_pad), batch_spec(latent_pad)] + \
               [const_spec(a) for a in weights]

    out_shapes = (
        jax.ShapeDtypeStruct((b_pad, output_pad), jnp.float32),   # x_hat
        jax.ShapeDtypeStruct((b_pad, latent_pad), jnp.float32),   # mean
        jax.ShapeDtypeStruct((b_pad, latent_pad), jnp.float32),   # log_var
        jax.ShapeDtypeStruct((b_pad, latent_pad), jnp.float32),   # z
    )
    out_specs = (batch_spec(output_pad), batch_spec(latent_pad),
                 batch_spec(latent_pad), batch_spec(latent_pad))

    # ----- static cost / VMEM accounting (pure Python ints; no jnp ops) -----
    weight_bytes = sum(math.prod(a.shape) * a.dtype.itemsize for a in weights)
    in_tile_bytes = tb * input_pad * x_p.dtype.itemsize + tb * latent_pad * 4
    out_tile_bytes = tb * (output_pad + 3 * latent_pad) * 4
    vmem_limit = int(min(
        weight_bytes + 2 * (in_tile_bytes + out_tile_bytes) + (8 << 20),
        100 * 1024 * 1024))

    flops = 2 * b_pad * (
        input_pad * hidden_pad          # FC_input
        + hidden_pad * hidden_pad       # FC_input2
        + hidden_pad * 2 * latent_pad   # fused FC_mean|FC_var
        + latent_pad * hidden_pad       # FC_hidden
        + hidden_pad * hidden_pad       # FC_hidden2
        + hidden_pad * output_pad       # FC_output
    )
    bytes_accessed = (
        weight_bytes                                        # weights read once
        + math.prod(x_p.shape) * x_p.dtype.itemsize
        + math.prod(eps_p.shape) * eps_p.dtype.itemsize
        + sum(math.prod(s.shape) * 4 for s in out_shapes))
    cost = pl.CostEstimate(flops=flops,
                           transcendentals=b_pad * latent_pad,
                           bytes_accessed=bytes_accessed)

    x_hat, mean, log_var, z = pl.pallas_call(
        vae_kernel,
        grid=grid,
        in_specs=in_specs,
        out_specs=out_specs,
        out_shape=out_shapes,
        compiler_params=pltpu.CompilerParams(
            dimension_semantics=("parallel",),
            vmem_limit_bytes=vmem_limit),
        cost_estimate=cost,
    )(*inputs)

    return (x_hat[:B, :output_dim],
            mean[:B, :latent_dim],
            log_var[:B, :latent_dim],
            z[:B, :latent_dim])


# --------------------------- test scaffolding ------------------------------

def init_params(key, input_dim, hidden_dim, latent_dim, output_dim):
    """Deterministic synthetic parameters.

    Weights are (in_features, out_features); biases are (1, out_features).
    """
    keys = jax.random.split(key, 14)

    def lin(kw, kb, fan_in, fan_out):
        scale = 1.0 / jnp.sqrt(fan_in)
        w = jax.random.uniform(kw, (fan_in, fan_out), jnp.float32, -scale, scale)
        b = jax.random.uniform(kb, (1, fan_out), jnp.float32, -scale, scale)
        return w, b

    p = {}
    # Encoder
    p["w_in"], p["b_in"] = lin(keys[0], keys[1], input_dim, hidden_dim)
    p["w_in2"], p["b_in2"] = lin(keys[2], keys[3], hidden_dim, hidden_dim)
    p["w_mean"], p["b_mean"] = lin(keys[4], keys[5], hidden_dim, latent_dim)
    p["w_var"], p["b_var"] = lin(keys[6], keys[7], hidden_dim, latent_dim)
    # Decoder
    p["w_h"], p["b_h"] = lin(keys[8], keys[9], latent_dim, hidden_dim)
    p["w_h2"], p["b_h2"] = lin(keys[10], keys[11], hidden_dim, hidden_dim)
    p["w_out"], p["b_out"] = lin(keys[12], keys[13], hidden_dim, output_dim)
    return p


def reference_forward(x, eps, p):
    """Pure-JAX f32 reference for verification."""
    h = jnp.maximum(x @ p["w_in"] + p["b_in"], 0.0)
    h = jnp.maximum(h @ p["w_in2"] + p["b_in2"], 0.0)
    mean = h @ p["w_mean"] + p["b_mean"]
    log_var = h @ p["w_var"] + p["b_var"]
    z = mean + jnp.exp(0.5 * log_var) * eps
    d = jnp.maximum(z @ p["w_h"] + p["b_h"], 0.0)
    d = jnp.maximum(d @ p["w_h2"] + p["b_h2"], 0.0)
    x_hat = d @ p["w_out"] + p["b_out"]
    return x_hat, mean, log_var, z


if __name__ == "__main__":
    # Small shapes consistent with the module: flat feature input.
    B, input_dim, hidden_dim, latent_dim = 8, 64, 32, 16
    output_dim = input_dim  # VAE reconstructs its input

    key = jax.random.PRNGKey(0)
    k_params, k_x, k_eps = jax.random.split(key, 3)

    params = init_params(k_params, input_dim, hidden_dim, latent_dim, output_dim)
    x = jax.random.normal(k_x, (B, input_dim), jnp.float32)
    # TODO(synk): torch.randn_like is an on-device RNG side effect; epsilon is
    # supplied as a deterministic explicit input instead.
    eps = jax.random.normal(k_eps, (B, latent_dim), jnp.float32)

    ref = reference_forward(x, eps, params)

    # --- f32 matmul operands: strict check ---
    pp_f32 = prepare_params(params, compute_dtype=jnp.float32)
    outs = vae_forward(x, eps, pp_f32, output_dim=output_dim)
    outs = jax.block_until_ready(outs)
    for got, want in zip(outs, ref):
        assert got.shape == want.shape
        assert jnp.allclose(got, want, atol=1e-5, rtol=1e-5), "f32 mismatch"

    # --- bf16 matmul operands (fast path on all MXU gens): loose check ---
    pp_bf16 = prepare_params(params, compute_dtype=jnp.bfloat16)
    outs_bf16 = vae_forward(x, eps, pp_bf16, output_dim=output_dim)
    outs_bf16 = jax.block_until_ready(outs_bf16)
    for got, want in zip(outs_bf16, ref):
        assert got.shape == want.shape
        num = float(jnp.linalg.norm((got - want).astype(jnp.float32)))
        den = float(jnp.linalg.norm(want.astype(jnp.float32))) + 1e-6
        assert num / den < 5e-2, "bf16 mismatch"

    print("KERNEL_OK")
</pallas_src>

<mosaic_0001>
module attributes {stable_mosaic.version = 11 : i64} {
  func.func @vae_kernel(%arg0: i32, %arg1: memref<8x128xf32, #tpu.memory_space<vmem>>, %arg2: memref<8x128xf32, #tpu.memory_space<vmem>>, %arg3: memref<128x128xf32, #tpu.memory_space<vmem>>, %arg4: memref<1x128xf32, #tpu.memory_space<vmem>>, %arg5: memref<128x128xf32, #tpu.memory_space<vmem>>, %arg6: memref<1x128xf32, #tpu.memory_space<vmem>>, %arg7: memref<128x256xf32, #tpu.memory_space<vmem>>, %arg8: memref<1x256xf32, #tpu.memory_space<vmem>>, %arg9: memref<128x128xf32, #tpu.memory_space<vmem>>, %arg10: memref<1x128xf32, #tpu.memory_space<vmem>>, %arg11: memref<128x128xf32, #tpu.memory_space<vmem>>, %arg12: memref<1x128xf32, #tpu.memory_space<vmem>>, %arg13: memref<128x128xf32, #tpu.memory_space<vmem>>, %arg14: memref<1x128xf32, #tpu.memory_space<vmem>>, %arg15: memref<8x128xf32, #tpu.memory_space<vmem>>, %arg16: memref<8x128xf32, #tpu.memory_space<vmem>>, %arg17: memref<8x128xf32, #tpu.memory_space<vmem>>, %arg18: memref<8x128xf32, #tpu.memory_space<vmem>>) attributes {dimension_semantics = [#tpu.dimension_semantics<parallel>], iteration_bounds = array<i64: 1>, scalar_prefetch = 0 : i64, scratch_operands = 0 : i64, tpu.core_type = #tpu.core_type<tc>, window_params = [{transform_indices = @transform_0, window_bounds = array<i64: 8, 128>}, {transform_indices = @transform_1, window_bounds = array<i64: 8, 128>}, {pipeline_mode = #tpu.pipeline_mode<synchronous>, transform_indices = @transform_2, window_bounds = array<i64: 128, 128>}, {pipeline_mode = #tpu.pipeline_mode<synchronous>, transform_indices = @transform_3, window_bounds = array<i64: 1, 128>}, {pipeline_mode = #tpu.pipeline_mode<synchronous>, transform_indices = @transform_4, window_bounds = array<i64: 128, 128>}, {pipeline_mode = #tpu.pipeline_mode<synchronous>, transform_indices = @transform_5, window_bounds = array<i64: 1, 128>}, {pipeline_mode = #tpu.pipeline_mode<synchronous>, transform_indices = @transform_6, window_bounds = array<i64: 128, 256>}, {pipeline_mode = #tpu.pipeline_mode<synchronous>, transform_indices = @transform_7, window_bounds = array<i64: 1, 256>}, {pipeline_mode = #tpu.pipeline_mode<synchronous>, transform_indices = @transform_8, window_bounds = array<i64: 128, 128>}, {pipeline_mode = #tpu.pipeline_mode<synchronous>, transform_indices = @transform_9, window_bounds = array<i64: 1, 128>}, {pipeline_mode = #tpu.pipeline_mode<synchronous>, transform_indices = @transform_10, window_bounds = array<i64: 128, 128>}, {pipeline_mode = #tpu.pipeline_mode<synchronous>, transform_indices = @transform_11, window_bounds = array<i64: 1, 128>}, {pipeline_mode = #tpu.pipeline_mode<synchronous>, transform_indices = @transform_12, window_bounds = array<i64: 128, 128>}, {pipeline_mode = #tpu.pipeline_mode<synchronous>, transform_indices = @transform_13, window_bounds = array<i64: 1, 128>}, {transform_indices = @transform_14, window_bounds = array<i64: 8, 128>}, {transform_indices = @transform_15, window_bounds = array<i64: 8, 128>}, {transform_indices = @transform_16, window_bounds = array<i64: 8, 128>}, {transform_indices = @transform_17, window_bounds = array<i64: 8, 128>}]} {
    %c0 = arith.constant 0 : index
    %c0_0 = arith.constant 0 : index
    %0 = vector.load %arg1[%c0, %c0_0] : memref<8x128xf32, #tpu.memory_space<vmem>>, vector<8x128xf32>
    %c0_1 = arith.constant 0 : index
    %c0_2 = arith.constant 0 : index
    %1 = vector.load %arg3[%c0_1, %c0_2] : memref<128x128xf32, #tpu.memory_space<vmem>>, vector<128x128xf32>
    %cst = arith.constant dense<0.000000e+00> : vector<8x128xf32>
    %2 = tpu.matmul %0, %1, %cst {dimension_numbers = #tpu.dot_dimension_numbers<[1], [0], [0], [1], [0, 0, 1, 1], [], []>} : vector<8x128xf32>, vector<128x128xf32>, vector<8x128xf32> -> vector<8x128xf32>
    %c0_3 = arith.constant 0 : index
    %c0_4 = arith.constant 0 : index
    %3 = vector.load %arg4[%c0_3, %c0_4] : memref<1x128xf32, #tpu.memory_space<vmem>>, vector<1x128xf32>
    %4 = vector.broadcast %3 : vector<1x128xf32> to vector<8x128xf32>
    %5 = arith.addf %2, %4 : vector<8x128xf32>
    %cst_5 = arith.constant 0.000000e+00 : f32
    %6 = vector.broadcast %cst_5 : f32 to vector<8x128xf32>
    %7 = arith.maximumf %5, %6 : vector<8x128xf32>
    %c0_6 = arith.constant 0 : index
    %c0_7 = arith.constant 0 : index
    %8 = vector.load %arg5[%c0_6, %c0_7] : memref<128x128xf32, #tpu.memory_space<vmem>>, vector<128x128xf32>
    %cst_8 = arith.constant dense<0.000000e+00> : vector<8x128xf32>
    %9 = tpu.matmul %7, %8, %cst_8 {dimension_numbers = #tpu.dot_dimension_numbers<[1], [0], [0], [1], [0, 0, 1, 1], [], []>} : vector<8x128xf32>, vector<128x128xf32>, vector<8x128xf32> -> vector<8x128xf32>
    %c0_9 = arith.constant 0 : index
    %c0_10 = arith.constant 0 : index
    %10 = vector.load %arg6[%c0_9, %c0_10] : memref<1x128xf32, #tpu.memory_space<vmem>>, vector<1x128xf32>
    %11 = vector.broadcast %10 : vector<1x128xf32> to vector<8x128xf32>
    %12 = arith.addf %9, %11 : vector<8x128xf32>
    %cst_11 = arith.constant 0.000000e+00 : f32
    %13 = vector.broadcast %cst_11 : f32 to vector<8x128xf32>
    %14 = arith.maximumf %12, %13 : vector<8x128xf32>
    %c0_12 = arith.constant 0 : index
    %c0_13 = arith.constant 0 : index
    %15 = vector.load %arg7[%c0_12, %c0_13] : memref<128x256xf32, #tpu.memory_space<vmem>>, vector<128x256xf32>
    %cst_14 = arith.constant dense<0.000000e+00> : vector<8x256xf32>
    %16 = tpu.matmul %14, %15, %cst_14 {dimension_numbers = #tpu.dot_dimension_numbers<[1], [0], [0], [1], [0, 0, 1, 1], [], []>} : vector<8x128xf32>, vector<128x256xf32>, vector<8x256xf32> -> vector<8x256xf32>
    %c0_15 = arith.constant 0 : index
    %c0_16 = arith.constant 0 : index
    %17 = vector.load %arg8[%c0_15, %c0_16] : memref<1x256xf32, #tpu.memory_space<vmem>>, vector<1x256xf32>
    %18 = vector.broadcast %17 : vector<1x256xf32> to vector<8x256xf32>
    %19 = arith.addf %16, %18 : vector<8x256xf32>
    %20 = vector.extract_strided_slice %19 {offsets = [0, 0], sizes = [8, 128], strides = [1, 1]} : vector<8x256xf32> to vector<8x128xf32>
    %21 = vector.extract_strided_slice %19 {offsets = [0, 128], sizes = [8, 128], strides = [1, 1]} : vector<8x256xf32> to vector<8x128xf32>
    %cst_17 = arith.constant 5.000000e-01 : f32
    %22 = vector.broadcast %cst_17 : f32 to vector<8x128xf32>
    %23 = arith.mulf %22, %21 : vector<8x128xf32>
    %24 = math.exp %23 : vector<8x128xf32>
    %c0_18 = arith.constant 0 : index
    %c0_19 = arith.constant 0 : index
    %25 = vector.load %arg2[%c0_18, %c0_19] : memref<8x128xf32, #tpu.memory_space<vmem>>, vector<8x128xf32>
    %26 = arith.mulf %24, %25 : vector<8x128xf32>
    %27 = arith.addf %20, %26 : vector<8x128xf32>
    %c0_20 = arith.constant 0 : index
    %c0_21 = arith.constant 0 : index
    %28 = vector.load %arg9[%c0_20, %c0_21] : memref<128x128xf32, #tpu.memory_space<vmem>>, vector<128x128xf32>
    %cst_22 = arith.constant dense<0.000000e+00> : vector<8x128xf32>
    %29 = tpu.matmul %27, %28, %cst_22 {dimension_numbers = #tpu.dot_dimension_numbers<[1], [0], [0], [1], [0, 0, 1, 1], [], []>} : vector<8x128xf32>, vector<128x128xf32>, vector<8x128xf32> -> vector<8x128xf32>
    %c0_23 = arith.constant 0 : index
    %c0_24 = arith.constant 0 : index
    %30 = vector.load %arg10[%c0_23, %c0_24] : memref<1x128xf32, #tpu.memory_space<vmem>>, vector<1x128xf32>
    %31 = vector.broadcast %30 : vector<1x128xf32> to vector<8x128xf32>
    %32 = arith.addf %29, %31 : vector<8x128xf32>
    %cst_25 = arith.constant 0.000000e+00 : f32
    %33 = vector.broadcast %cst_25 : f32 to vector<8x128xf32>
    %34 = arith.maximumf %32, %33 : vector<8x128xf32>
    %c0_26 = arith.constant 0 : index
    %c0_27 = arith.constant 0 : index
    %35 = vector.load %arg11[%c0_26, %c0_27] : memref<128x128xf32, #tpu.memory_space<vmem>>, vector<128x128xf32>
    %cst_28 = arith.constant dense<0.000000e+00> : vector<8x128xf32>
    %36 = tpu.matmul %34, %35, %cst_28 {dimension_numbers = #tpu.dot_dimension_numbers<[1], [0], [0], [1], [0, 0, 1, 1], [], []>} : vector<8x128xf32>, vector<128x128xf32>, vector<8x128xf32> -> vector<8x128xf32>
    %c0_29 = arith.constant 0 : index
    %c0_30 = arith.constant 0 : index
    %37 = vector.load %arg12[%c0_29, %c0_30] : memref<1x128xf32, #tpu.memory_space<vmem>>, vector<1x128xf32>
    %38 = vector.broadcast %37 : vector<1x128xf32> to vector<8x128xf32>
    %39 = arith.addf %36, %38 : vector<8x128xf32>
    %cst_31 = arith.constant 0.000000e+00 : f32
    %40 = vector.broadcast %cst_31 : f32 to vector<8x128xf32>
    %41 = arith.maximumf %39, %40 : vector<8x128xf32>
    %c0_32 = arith.constant 0 : index
    %c0_33 = arith.constant 0 : index
    %42 = vector.load %arg13[%c0_32, %c0_33] : memref<128x128xf32, #tpu.memory_space<vmem>>, vector<128x128xf32>
    %cst_34 = arith.constant dense<0.000000e+00> : vector<8x128xf32>
    %43 = tpu.matmul %41, %42, %cst_34 {dimension_numbers = #tpu.dot_dimension_numbers<[1], [0], [0], [1], [0, 0, 1, 1], [], []>} : vector<8x128xf32>, vector<128x128xf32>, vector<8x128xf32> -> vector<8x128xf32>
    %c0_35 = arith.constant 0 : index
    %c0_36 = arith.constant 0 : index
    %44 = vector.load %arg14[%c0_35, %c0_36] : memref<1x128xf32, #tpu.memory_space<vmem>>, vector<1x128xf32>
    %45 = vector.broadcast %44 : vector<1x128xf32> to vector<8x128xf32>
    %46 = arith.addf %43, %45 : vector<8x128xf32>
    %c0_37 = arith.constant 0 : index
    %c0_38 = arith.constant 0 : index
    %47 = vector.load %arg15[%c0_37, %c0_38] : memref<8x128xf32, #tpu.memory_space<vmem>>, vector<8x128xf32>
    tpu.vector_store %arg15[%c0_37, %c0_38], %46 {strides = array<i32>} : memref<8x128xf32, #tpu.memory_space<vmem>>, vector<8x128xf32>,
    %c0_39 = arith.constant 0 : index
    %c0_40 = arith.constant 0 : index
    %48 = vector.load %arg16[%c0_39, %c0_40] : memref<8x128xf32, #tpu.memory_space<vmem>>, vector<8x128xf32>
    tpu.vector_store %arg16[%c0_39, %c0_40], %20 {strides = array<i32>} : memref<8x128xf32, #tpu.memory_space<vmem>>, vector<8x128xf32>,
    %c0_41 = arith.constant 0 : index
    %c0_42 = arith.constant 0 : index
    %49 = vector.load %arg17[%c0_41, %c0_42] : memref<8x128xf32, #tpu.memory_space<vmem>>, vector<8x128xf32>
    tpu.vector_store %arg17[%c0_41, %c0_42], %21 {strides = array<i32>} : memref<8x128xf32, #tpu.memory_space<vmem>>, vector<8x128xf32>,
    %c0_43 = arith.constant 0 : index
    %c0_44 = arith.constant 0 : index
    %50 = vector.load %arg18[%c0_43, %c0_44] : memref<8x128xf32, #tpu.memory_space<vmem>>, vector<8x128xf32>
    tpu.vector_store %arg18[%c0_43, %c0_44], %27 {strides = array<i32>} : memref<8x128xf32, #tpu.memory_space<vmem>>, vector<8x128xf32>,
    return
  }
  func.func @transform_0(%arg0: i32) -> (i32, i32) {
    %c0_i32 = arith.constant 0 : i32
    %c0_i32_0 = arith.constant 0 : i32
    return %arg0, %c0_i32 : i32, i32
  }
  func.func @transform_1(%arg0: i32) -> (i32, i32) {
    %c0_i32 = arith.constant 0 : i32
    %c0_i32_0 = arith.constant 0 : i32
    return %arg0, %c0_i32 : i32, i32
  }
  func.func @transform_2(%arg0: i32) -> (i32, i32) {
    %c0_i32 = arith.constant 0 : i32
    %c0_i32_0 = arith.constant 0 : i32
    %c0_i32_1 = arith.constant 0 : i32
    return %c0_i32, %c0_i32_0 : i32, i32
  }
  func.func @transform_3(%arg0: i32) -> (i32, i32) {
    %c0_i32 = arith.constant 0 : i32
    %c0_i32_0 = arith.constant 0 : i32
    %c0_i32_1 = arith.constant 0 : i32
    return %c0_i32, %c0_i32_0 : i32, i32
  }
  func.func @transform_4(%arg0: i32) -> (i32, i32) {
    %c0_i32 = arith.constant 0 : i32
    %c0_i32_0 = arith.constant 0 : i32
    %c0_i32_1 = arith.constant 0 : i32
    return %c0_i32, %c0_i32_0 : i32, i32
  }
  func.func @transform_5(%arg0: i32) -> (i32, i32) {
    %c0_i32 = arith.constant 0 : i32
    %c0_i32_0 = arith.constant 0 : i32
    %c0_i32_1 = arith.constant 0 : i32
    return %c0_i32, %c0_i32_0 : i32, i32
  }
  func.func @transform_6(%arg0: i32) -> (i32, i32) {
    %c0_i32 = arith.constant 0 : i32
    %c0_i32_0 = arith.constant 0 : i32
    %c0_i32_1 = arith.constant 0 : i32
    return %c0_i32, %c0_i32_0 : i32, i32
  }
  func.func @transform_7(%arg0: i32) -> (i32, i32) {
    %c0_i32 = arith.constant 0 : i32
    %c0_i32_0 = arith.constant 0 : i32
    %c0_i32_1 = arith.constant 0 : i32
    return %c0_i32, %c0_i32_0 : i32, i32
  }
  func.func @transform_8(%arg0: i32) -> (i32, i32) {
    %c0_i32 = arith.constant 0 : i32
    %c0_i32_0 = arith.constant 0 : i32
    %c0_i32_1 = arith.constant 0 : i32
    return %c0_i32, %c0_i32_0 : i32, i32
  }
  func.func @transform_9(%arg0: i32) -> (i32, i32) {
    %c0_i32 = arith.constant 0 : i32
    %c0_i32_0 = arith.constant 0 : i32
    %c0_i32_1 = arith.constant 0 : i32
    return %c0_i32, %c0_i32_0 : i32, i32
  }
  func.func @transform_10(%arg0: i32) -> (i32, i32) {
    %c0_i32 = arith.constant 0 : i32
    %c0_i32_0 = arith.constant 0 : i32
    %c0_i32_1 = arith.constant 0 : i32
    return %c0_i32, %c0_i32_0 : i32, i32
  }
  func.func @transform_11(%arg0: i32) -> (i32, i32) {
    %c0_i32 = arith.constant 0 : i32
    %c0_i32_0 = arith.constant 0 : i32
    %c0_i32_1 = arith.constant 0 : i32
    return %c0_i32, %c0_i32_0 : i32, i32
  }
  func.func @transform_12(%arg0: i32) -> (i32, i32) {
    %c0_i32 = arith.constant 0 : i32
    %c0_i32_0 = arith.constant 0 : i32
    %c0_i32_1 = arith.constant 0 : i32
    return %c0_i32, %c0_i32_0 : i32, i32
  }
  func.func @transform_13(%arg0: i32) -> (i32, i32) {
    %c0_i32 = arith.constant 0 : i32
    %c0_i32_0 = arith.constant 0 : i32
    %c0_i32_1 = arith.constant 0 : i32
    return %c0_i32, %c0_i32_0 : i32, i32
  }
  func.func @transform_14(%arg0: i32) -> (i32, i32) {
    %c0_i32 = arith.constant 0 : i32
    %c0_i32_0 = arith.constant 0 : i32
    return %arg0, %c0_i32 : i32, i32
  }
  func.func @transform_15(%arg0: i32) -> (i32, i32) {
    %c0_i32 = arith.constant 0 : i32
    %c0_i32_0 = arith.constant 0 : i32
    return %arg0, %c0_i32 : i32, i32
  }
  func.func @transform_16(%arg0: i32) -> (i32, i32) {
    %c0_i32 = arith.constant 0 : i32
    %c0_i32_0 = arith.constant 0 : i32
    return %arg0, %c0_i32 : i32, i32
  }
  func.func @transform_17(%arg0: i32) -> (i32, i32) {
    %c0_i32 = arith.constant 0 : i32
    %c0_i32_0 = arith.constant 0 : i32
    return %arg0, %c0_i32 : i32, i32
  }
}

</mosaic_0001>

<llo_original>
// kernel: vae_forward.1
$region0: #{vae_forward.1}
  #allocation0 [shape = 'u32[]', space=smem, size = 0x4, offset = 0x4, fixed_abs, tag = 'smem constant byte address 0x4 - core index']
  #allocation1 [shape = 'u32[144,128]{1,0:T(1,128)}', space=vmem, size = 0x12000, scoped, tag = 'internal scratch']
  %s0 = inlined_call_operand.vmem [shape: f32[8,128], index: 0, kind: input, shape index: {}]
  %s1 = inlined_call_operand.vmem [shape: f32[8,128], index: 1, kind: input, shape index: {}]
  %s2 = inlined_call_operand.hbm [shape: f32[128,128], index: 2, kind: input, shape index: {}]
  %s3 = inlined_call_operand.vmem [shape: f32[1,128], index: 3, kind: input, shape index: {}]
  %s4 = inlined_call_operand.hbm [shape: f32[128,128], index: 4, kind: input, shape index: {}]
  %s5 = inlined_call_operand.vmem [shape: f32[1,128], index: 5, kind: input, shape index: {}]
  %s6 = inlined_call_operand.hbm [shape: f32[128,256], index: 6, kind: input, shape index: {}]
  %s7 = inlined_call_operand.vmem [shape: f32[1,256], index: 7, kind: input, shape index: {}]
  %s8 = inlined_call_operand.hbm [shape: f32[128,128], index: 8, kind: input, shape index: {}]
  %s9 = inlined_call_operand.vmem [shape: f32[1,128], index: 9, kind: input, shape index: {}]
  %s10 = inlined_call_operand.hbm [shape: f32[128,128], index: 10, kind: input, shape index: {}]
  %s11 = inlined_call_operand.vmem [shape: f32[1,128], index: 11, kind: input, shape index: {}]
  %s12 = inlined_call_operand.hbm [shape: f32[128,128], index: 12, kind: input, shape index: {}]
  %s13 = inlined_call_operand.vmem [shape: f32[1,128], index: 13, kind: input, shape index: {}]
  %s14 = inlined_call_operand.hbm [shape: f32[8,128], index: 14, kind: output, shape index: {0}]
  %s15 = inlined_call_operand.hbm [shape: f32[8,128], index: 15, kind: output, shape index: {1}]
  %s16 = inlined_call_operand.hbm [shape: f32[8,128], index: 16, kind: output, shape index: {2}]
  %s17 = inlined_call_operand.hbm [shape: f32[8,128], index: 17, kind: output, shape index: {3}]
  %18 = xla_tuple %s14, %s15, %s16, %s17
  %s19 = sld [smem:[#allocation0]]
  $region114: #{vae_forward.1} parent=0
    _
  %s21 = ssub.s32 1, %s19
  %s22 = scalar_select 0, %s21, %s19
  $region1: #{vae_forward.1} parent=0
    #allocation2 [shape = 'u8[65536]{0}', space=vmem, size = 0x10000, scoped, tag = 'input window, operand 2, single buffered']
    #allocation3 [shape = 's32[1]{0}', space=sflag, size = 0x4, scoped, tag = 'scoped memory for vae_forward.1']
    #allocation4 [shape = 's32[1]{0}', space=sflag, size = 0x4, scoped, tag = 'scoped memory for vae_forward.1']
    #allocation5 [shape = 'u8[65536]{0}', space=vmem, size = 0x10000, scoped, tag = 'input window, operand 4, single buffered']
    #allocation6 [shape = 's32[1]{0}', space=sflag, size = 0x4, scoped, tag = 'scoped memory for vae_forward.1']
    #allocation7 [shape = 'u8[131072]{0}', space=vmem, size = 0x20000, scoped, tag = 'input window, operand 6, single buffered']
    #allocation8 [shape = 'u8[65536]{0}', space=vmem, size = 0x10000, scoped, tag = 'input window, operand 8, single buffered']
    #allocation9 [shape = 's32[1]{0}', space=sflag, size = 0x4, scoped, tag = 'scoped memory for vae_forward.1']
    #allocation10 [shape = 'u8[65536]{0}', space=vmem, size = 0x10000, scoped, tag = 'input window, operand 10, single buffered']
    #allocation11 [shape = 'u8[65536]{0}', space=vmem, size = 0x10000, scoped, tag = 'input window, operand 12, single buffered']
    #allocation12 [shape = 's32[1]{0}', space=sflag, size = 0x4, scoped, tag = 'scoped memory for vae_forward.1']
    #allocation13 [shape = 'u8[4096]{0}', space=vmem, size = 0x1000, scoped, tag = 'output window, operand 0, single buffered']
    #allocation14 [shape = 'u8[4096]{0}', space=vmem, size = 0x1000, scoped, tag = 'output window, operand 1, single buffered']
    #allocation15 [shape = 's32[1]{0}', space=sflag, size = 0x4, scoped, tag = 'scoped memory for vae_forward.1']
    #allocation16 [shape = 'u8[4096]{0}', space=vmem, size = 0x1000, scoped, tag = 'output window, operand 2, single buffered']
    #allocation17 [shape = 'u8[4096]{0}', space=vmem, size = 0x1000, scoped, tag = 'output window, operand 3, single buffered']
    #allocation18 [shape = 's32[1]{0}', space=sflag, size = 0x4, scoped, tag = 'scoped memory for vae_forward.1']
    %23 = vsyncpa [#allocation3], 0
    %24 = vsyncpa [#allocation6], 0
    %25 = vsyncpa [#allocation9], 0
    %26 = vsyncpa [#allocation12], 0
    %27 = vsyncpa [#allocation4], 0
    %28 = vsyncpa [#allocation15], 0
    %29 = vsyncpa [#allocation18], 0
    // Predicated region
    $region2: #{vae_forward.1} parent=1 // pred_check
      _
    $region3: #{vae_forward.1} parent=1 // pred_check_branch
      %31 = sbr.rel (0) target = $region5
    $region4: #{vae_forward.1} parent=1 // pred_region
      _
    $region5: #{vae_forward.1} parent=1 // pred_fallthru
      _
    // Predicated region
    $region6: #{vae_forward.1} parent=1 // pred_check
      _
    $region7: #{vae_forward.1} parent=1 // pred_check_branch
      %33 = sbr.rel (0) target = $region9
    $region8: #{vae_forward.1} parent=1 // pred_region
      _
    $region9: #{vae_forward.1} parent=1 // pred_fallthru
      _
    // Predicated region
    $region10: #{vae_forward.1} parent=1 // pred_check
      _
    $region11: #{vae_forward.1} parent=1 // pred_check_branch
      %35 = sbr.rel (0) target = $region13
    $region12: #{vae_forward.1} parent=1 // pred_region
      %s37 = ssub.s32 2048, 2048
      %38 = vsyncadd [#allocation3], %s37
      %s39 = sshll.u32 [#allocation2], 4
      %s40 = int_to_ptr.vmem [resolvable:$true] %s39
      %45 = dma.hbm_to_vmem [thread:$0]  %s2, 2048, %s40, [#allocation3], 128, 128, 8
    $region13: #{vae_forward.1} parent=1 // pred_fallthru
      _
    // Predicated region
    $region14: #{vae_forward.1} parent=1 // pred_check
      _
    $region15: #{vae_forward.1} parent=1 // pred_check_branch
      %47 = sbr.rel (0) target = $region17
    $region16: #{vae_forward.1} parent=1 // pred_region
      _
    $region17: #{vae_forward.1} parent=1 // pred_fallthru
      _
    // Predicated region
    $region18: #{vae_forward.1} parent=1 // pred_check
      _
    $region19: #{vae_forward.1} parent=1 // pred_check_branch
      %49 = sbr.rel (0) target = $region21
    $region20: #{vae_forward.1} parent=1 // pred_region
      %s51 = ssub.s32 2048, 2048
      %52 = vsyncadd [#allocation6], %s51
      %s53 = sshll.u32 [#allocation5], 4
      %s54 = int_to_ptr.vmem [resolvable:$true] %s53
      %59 = dma.hbm_to_vmem [thread:$0]  %s4, 2048, %s54, [#allocation6], 128, 128, 8
    $region21: #{vae_forward.1} parent=1 // pred_fallthru
      _
    // Predicated region
    $region22: #{vae_forward.1} parent=1 // pred_check
      _
    $region23: #{vae_forward.1} parent=1 // pred_check_branch
      %61 = sbr.rel (0) target = $region25
    $region24: #{vae_forward.1} parent=1 // pred_region
      _
    $region25: #{vae_forward.1} parent=1 // pred_fallthru
      _
    // Predicated region
    $region26: #{vae_forward.1} parent=1 // pred_check
      _
    $region27: #{vae_forward.1} parent=1 // pred_check_branch
      %63 = sbr.rel (0) target = $region29
    $region28: #{vae_forward.1} parent=1 // pred_region
      %s65 = ssub.s32 4096, 4096
      %66 = vsyncadd [#allocation6], %s65
      %s67 = sshll.u32 [#allocation7], 4
      %s68 = int_to_ptr.vmem [resolvable:$true] %s67
      %73 = dma.hbm_to_vmem [thread:$0]  %s6, 4096, %s68, [#allocation6], 256, 256, 16
    $region29: #{vae_forward.1} parent=1 // pred_fallthru
      _
    // Predicated region
    $region30: #{vae_forward.1} parent=1 // pred_check
      _
    $region31: #{vae_forward.1} parent=1 // pred_check_branch
      %75 = sbr.rel (0) target = $region33
    $region32: #{vae_forward.1} parent=1 // pred_region
      _
    $region33: #{vae_forward.1} parent=1 // pred_fallthru
      _
    // Predicated region
    $region34: #{vae_forward.1} parent=1 // pred_check
      _
    $region35: #{vae_forward.1} parent=1 // pred_check_branch
      %77 = sbr.rel (0) target = $region37
    $region36: #{vae_forward.1} parent=1 // pred_region
      %s79 = ssub.s32 2048, 2048
      %80 = vsyncadd [#allocation9], %s79
      %s81 = sshll.u32 [#allocation8], 4
      %s82 = int_to_ptr.vmem [resolvable:$true] %s81
      %87 = dma.hbm_to_vmem [thread:$0]  %s8, 2048, %s82, [#allocation9], 128, 128, 8
    $region37: #{vae_forward.1} parent=1 // pred_fallthru
      _
    // Predicated region
    $region38: #{vae_forward.1} parent=1 // pred_check
      _
    $region39: #{vae_forward.1} parent=1 // pred_check_branch
      %89 = sbr.rel (0) target = $region41
    $region40: #{vae_forward.1} parent=1 // pred_region
      _
    $region41: #{vae_forward.1} parent=1 // pred_fallthru
      _
    // Predicated region
    $region42: #{vae_forward.1} parent=1 // pred_check
      _
    $region43: #{vae_forward.1} parent=1 // pred_check_branch
      %91 = sbr.rel (0) target = $region45
    $region44: #{vae_forward.1} parent=1 // pred_region
      %s93 = ssub.s32 2048, 2048
      %94 = vsyncadd [#allocation9], %s93
      %s95 = sshll.u32 [#allocation10], 4
      %s96 = int_to_ptr.vmem [resolvable:$true] %s95
      %101 = dma.hbm_to_vmem [thread:$0]  %s10, 2048, %s96, [#allocation9], 128, 128, 8
    $region45: #{vae_forward.1} parent=1 // pred_fallthru
      _
    // Predicated region
    $region46: #{vae_forward.1} parent=1 // pred_check
      _
    $region47: #{vae_forward.1} parent=1 // pred_check_branch
      %103 = sbr.rel (0) target = $region49
    $region48: #{vae_forward.1} parent=1 // pred_region
      _
    $region49: #{vae_forward.1} parent=1 // pred_fallthru
      _
    // Predicated region
    $region50: #{vae_forward.1} parent=1 // pred_check
      _
    $region51: #{vae_forward.1} parent=1 // pred_check_branch
      %105 = sbr.rel (0) target = $region53
    $region52: #{vae_forward.1} parent=1 // pred_region
      %s107 = ssub.s32 2048, 2048
      %108 = vsyncadd [#allocation12], %s107
      %s109 = sshll.u32 [#allocation11], 4
      %s110 = int_to_ptr.vmem [resolvable:$true] %s109
      %115 = dma.hbm_to_vmem [thread:$0]  %s12, 2048, %s110, [#allocation12], 128, 128, 8
    $region53: #{vae_forward.1} parent=1 // pred_fallthru
      _
    // Predicated region
    $region54: #{vae_forward.1} parent=1 // pred_check
      _
    $region55: #{vae_forward.1} parent=1 // pred_check_branch
      %117 = sbr.rel (0) target = $region57
    $region56: #{vae_forward.1} parent=1 // pred_region
      _
    $region57: #{vae_forward.1} parent=1 // pred_fallthru
      _
    // Predicated region
    $region58: #{vae_forward.1} parent=1 // pred_check
      _
    $region59: #{vae_forward.1} parent=1 // pred_check_branch
      %119 = sbr.rel (0) target = $region61
    $region60: #{vae_forward.1} parent=1 // pred_region
      %120 = dma.done [#allocation3], 2048
    $region61: #{vae_forward.1} parent=1 // pred_fallthru
      _
    // Predicated region
    $region62: #{vae_forward.1} parent=1 // pred_check
      _
    $region63: #{vae_forward.1} parent=1 // pred_check_branch
      %122 = sbr.rel (0) target = $region65
    $region64: #{vae_forward.1} parent=1 // pred_region
      %123 = dma.done [#allocation6], 2048
    $region65: #{vae_forward.1} parent=1 // pred_fallthru
      _
    // Predicated region
    $region66: #{vae_forward.1} parent=1 // pred_check
      _
    $region67: #{vae_forward.1} parent=1 // pred_check_branch
      %125 = sbr.rel (0) target = $region69
    $region68: #{vae_forward.1} parent=1 // pred_region
      %126 = dma.done [#allocation6], 4096
    $region69: #{vae_forward.1} parent=1 // pred_fallthru
      _
    // Predicated region
    $region70: #{vae_forward.1} parent=1 // pred_check
      _
    $region71: #{vae_forward.1} parent=1 // pred_check_branch
      %128 = sbr.rel (0) target = $region73
    $region72: #{vae_forward.1} parent=1 // pred_region
      %129 = dma.done [#allocation9], 2048
    $region73: #{vae_forward.1} parent=1 // pred_fallthru
      _
    // Predicated region
    $region74: #{vae_forward.1} parent=1 // pred_check
      _
    $region75: #{vae_forward.1} parent=1 // pred_check_branch
      %131 = sbr.rel (0) target = $region77
    $region76: #{vae_forward.1} parent=1 // pred_region
      %132 = dma.done [#allocation9], 2048
    $region77: #{vae_forward.1} parent=1 // pred_fallthru
      _
    // Predicated region
    $region78: #{vae_forward.1} parent=1 // pred_check
      _
    $region79: #{vae_forward.1} parent=1 // pred_check_branch
      %134 = sbr.rel (0) target = $region81
    $region80: #{vae_forward.1} parent=1 // pred_region
      %135 = dma.done [#allocation12], 2048
    $region81: #{vae_forward.1} parent=1 // pred_fallthru
      _
    %v136 = vld [vmem:[%s0] sm:$0xff]
    %v137 = vld [vmem:[#allocation2] sm:$0xff]
    %v138 = vld [vmem:[#allocation2 + $0x8] sm:$0xff]
    %v139 = vld [vmem:[#allocation2 + $0x10] sm:$0xff]
    %v140 = vld [vmem:[#allocation2 + $0x18] sm:$0xff]
    %v141 = vld [vmem:[#allocation2 + $0x20] sm:$0xff]
    %v142 = vld [vmem:[#allocation2 + $0x28] sm:$0xff]
    %v143 = vld [vmem:[#allocation2 + $0x30] sm:$0xff]
    %v144 = vld [vmem:[#allocation2 + $0x38] sm:$0xff]
    %v145 = vld [vmem:[#allocation2 + $0x40] sm:$0xff]
    %v146 = vld [vmem:[#allocation2 + $0x48] sm:$0xff]
    %v147 = vld [vmem:[#allocation2 + $0x50] sm:$0xff]
    %v148 = vld [vmem:[#allocation2 + $0x58] sm:$0xff]
    %v149 = vld [vmem:[#allocation2 + $0x60] sm:$0xff]
    %v150 = vld [vmem:[#allocation2 + $0x68] sm:$0xff]
    %v151 = vld [vmem:[#allocation2 + $0x70] sm:$0xff]
    %v152 = vld [vmem:[#allocation2 + $0x78] sm:$0xff]
    %v153 = vld [vmem:[%s3] sm:$0x1]
    %v155 = vlaneseq
    %v156 = vshrl.u32 %v155, 7
    %v157 = vsub.s32 0, %v156
    %v158 = vrot.slane %v153, %v157
    %160 = vmatprep.subr.mxu0 0.0
    %161 = vmatpush1.msra.mxu0 %v137
    %162 = vmatprep.subr.mxu0 0.0
    %163 = vmatpush1.msra.mxu0 %v138
    %164 = vmatprep.subr.mxu0 0.0
    %165 = vmatpush1.msra.mxu0 %v139
    %166 = vmatprep.subr.mxu0 0.0
    %167 = vmatpush1.msra.mxu0 %v140
    %168 = vmatprep.subr.mxu0 0.0
    %169 = vmatpush1.msra.mxu0 %v141
    %170 = vmatprep.subr.mxu0 0.0
    %171 = vmatpush1.msra.mxu0 %v142
    %172 = vmatprep.subr.mxu0 0.0
    %173 = vmatpush1.msra.mxu0 %v143
    %174 = vmatprep.subr.mxu0 0.0
    %175 = vmatpush1.msra.mxu0 %v144
    %176 = vmatprep.subr.mxu0 0.0
    %177 = vmatpush1.msra.mxu0 %v145
    %178 = vmatprep.subr.mxu0 0.0
    %179 = vmatpush1.msra.mxu0 %v146
    %180 = vmatprep.subr.mxu0 0.0
    %181 = vmatpush1.msra.mxu0 %v147
    %182 = vmatprep.subr.mxu0 0.0
    %183 = vmatpush1.msra.mxu0 %v148
    %184 = vmatprep.subr.mxu0 0.0
    %185 = vmatpush1.msra.mxu0 %v149
    %186 = vmatprep.subr.mxu0 0.0
    %187 = vmatpush1.msra.mxu0 %v150
    %188 = vmatprep.subr.mxu0 0.0
    %189 = vmatpush1.msra.mxu0 %v151
    %190 = vmatprep.subr.mxu0 0.0
    %191 = vmatpush1.msra.mxu0 %v152
    %192 = vmatprep.subr.mxu0 0.0
    %193 = vmatpush1.msra.mxu0 0.0
    %194 = vmatprep.subr.mxu0 0.0
    %195 = vmatpush1.msra.mxu0 0.0
    %196 = vmatprep.subr.mxu0 0.0
    %197 = vmatpush1.msra.mxu0 0.0
    %198 = vmatprep.subr.mxu0 0.0
    %199 = vmatpush1.msra.mxu0 0.0
    %200 = vmatprep.subr.mxu0 0.0
    %201 = vmatpush1.msra.mxu0 0.0
    %202 = vmatprep.subr.mxu0 0.0
    %203 = vmatpush1.msra.mxu0 0.0
    %204 = vmatprep.subr.mxu0 0.0
    %205 = vmatpush1.msra.mxu0 0.0
    %206 = vmatprep.subr.mxu0 0.0
    %207 = vmatpush1.msra.mxu0 0.0
    %208 = vmatprep.subr.mxu0 0.0
    %209 = vmatpush1.msra.mxu0 0.0
    %210 = vmatprep.subr.mxu0 0.0
    %211 = vmatpush1.msra.mxu0 0.0
    %212 = vmatprep.subr.mxu0 0.0
    %213 = vmatpush1.msra.mxu0 0.0
    %214 = vmatprep.subr.mxu0 0.0
    %215 = vmatpush1.msra.mxu0 0.0
    %216 = vmatprep.subr.mxu0 0.0
    %217 = vmatpush1.msra.mxu0 0.0
    %218 = vmatprep.subr.mxu0 0.0
    %219 = vmatpush1.msra.mxu0 0.0
    %220 = vmatprep.subr.mxu0 0.0
    %221 = vmatpush1.msra.mxu0 0.0
    %222 = vmatprep.subr.mxu0 0.0
    %223 = vmatpush1.msra.mxu0 0.0
    %224 = vmatprep.mubr.f32.mxu0 0.0
    %225 = vmatmul.mubr.f32.gmra.mrb[0].mxu0 %v136
    %v226 = vpop.f32.mrb[0].mxu0
    %v227 = vadd.f32 %v158, %v226
    %v228 = vpop.f32.mrb[0].mxu0
    %229 = vdwg.mxu0
    %v230 = vmax.f32 %v227, 0.0
    %v231 = vld [vmem:[#allocation5] sm:$0xff]
    %v232 = vld [vmem:[#allocation5 + $0x8] sm:$0xff]
    %v233 = vld [vmem:[#allocation5 + $0x10] sm:$0xff]
    %v234 = vld [vmem:[#allocation5 + $0x18] sm:$0xff]
    %v235 = vld [vmem:[#allocation5 + $0x20] sm:$0xff]
    %v236 = vld [vmem:[#allocation5 + $0x28] sm:$0xff]
    %v237 = vld [vmem:[#allocation5 + $0x30] sm:$0xff]
    %v238 = vld [vmem:[#allocation5 + $0x38] sm:$0xff]
    %v239 = vld [vmem:[#allocation5 + $0x40] sm:$0xff]
    %v240 = vld [vmem:[#allocation5 + $0x48] sm:$0xff]
    %v241 = vld [vmem:[#allocation5 + $0x50] sm:$0xff]
    %v242 = vld [vmem:[#allocation5 + $0x58] sm:$0xff]
    %v243 = vld [vmem:[#allocation5 + $0x60] sm:$0xff]
    %v244 = vld [vmem:[#allocation5 + $0x68] sm:$0xff]
    %v245 = vld [vmem:[#allocation5 + $0x70] sm:$0xff]
    %v246 = vld [vmem:[#allocation5 + $0x78] sm:$0xff]
    %v247 = vld [vmem:[%s5] sm:$0x1]
    %v249 = vlaneseq
    %v250 = vshrl.u32 %v249, 7
    %v251 = vsub.s32 0, %v250
    %v252 = vrot.slane %v247, %v251
    %254 = vmatprep.subr.mxu0 0.0
    %255 = vmatpush1.msra.mxu0 %v231
    %256 = vmatprep.subr.mxu0 0.0
    %257 = vmatpush1.msra.mxu0 %v232
    %258 = vmatprep.subr.mxu0 0.0
    %259 = vmatpush1.msra.mxu0 %v233
    %260 = vmatprep.subr.mxu0 0.0
    %261 = vmatpush1.msra.mxu0 %v234
    %262 = vmatprep.subr.mxu0 0.0
    %263 = vmatpush1.msra.mxu0 %v235
    %264 = vmatprep.subr.mxu0 0.0
    %265 = vmatpush1.msra.mxu0 %v236
    %266 = vmatprep.subr.mxu0 0.0
    %267 = vmatpush1.msra.mxu0 %v237
    %268 = vmatprep.subr.mxu0 0.0
    %269 = vmatpush1.msra.mxu0 %v238
    %270 = vmatprep.subr.mxu0 0.0
    %271 = vmatpush1.msra.mxu0 %v239
    %272 = vmatprep.subr.mxu0 0.0
    %273 = vmatpush1.msra.mxu0 %v240
    %274 = vmatprep.subr.mxu0 0.0
    %275 = vmatpush1.msra.mxu0 %v241
    %276 = vmatprep.subr.mxu0 0.0
    %277 = vmatpush1.msra.mxu0 %v242
    %278 = vmatprep.subr.mxu0 0.0
    %279 = vmatpush1.msra.mxu0 %v243
    %280 = vmatprep.subr.mxu0 0.0
    %281 = vmatpush1.msra.mxu0 %v244
    %282 = vmatprep.subr.mxu0 0.0
    %283 = vmatpush1.msra.mxu0 %v245
    %284 = vmatprep.subr.mxu0 0.0
    %285 = vmatpush1.msra.mxu0 %v246
    %286 = vmatprep.subr.mxu0 0.0
    %287 = vmatpush1.msra.mxu0 0.0
    %288 = vmatprep.subr.mxu0 0.0
    %289 = vmatpush1.msra.mxu0 0.0
    %290 = vmatprep.subr.mxu0 0.0
    %291 = vmatpush1.msra.mxu0 0.0
    %292 = vmatprep.subr.mxu0 0.0
    %293 = vmatpush1.msra.mxu0 0.0
    %294 = vmatprep.subr.mxu0 0.0
    %295 = vmatpush1.msra.mxu0 0.0
    %296 = vmatprep.subr.mxu0 0.0
    %297 = vmatpush1.msra.mxu0 0.0
    %298 = vmatprep.subr.mxu0 0.0
    %299 = vmatpush1.msra.mxu0 0.0
    %300 = vmatprep.subr.mxu0 0.0
    %301 = vmatpush1.msra.mxu0 0.0
    %302 = vmatprep.subr.mxu0 0.0
    %303 = vmatpush1.msra.mxu0 0.0
    %304 = vmatprep.subr.mxu0 0.0
    %305 = vmatpush1.msra.mxu0 0.0
    %306 = vmatprep.subr.mxu0 0.0
    %307 = vmatpush1.msra.mxu0 0.0
    %308 = vmatprep.subr.mxu0 0.0
    %309 = vmatpush1.msra.mxu0 0.0
    %310 = vmatprep.subr.mxu0 0.0
    %311 = vmatpush1.msra.mxu0 0.0
    %312 = vmatprep.subr.mxu0 0.0
    %313 = vmatpush1.msra.mxu0 0.0
    %314 = vmatprep.subr.mxu0 0.0
    %315 = vmatpush1.msra.mxu0 0.0
    %316 = vmatprep.subr.mxu0 0.0
    %317 = vmatpush1.msra.mxu0 0.0
    %318 = vmatprep.mubr.f32.mxu0 0.0
    %319 = vmatmul.mubr.f32.gmra.mrb[0].mxu0 %v230
    %v320 = vpop.f32.mrb[0].mxu0
    %v321 = vadd.f32 %v252, %v320
    %v322 = vpop.f32.mrb[0].mxu0
    %323 = vdwg.mxu0
    %v324 = vmax.f32 %v321, 0.0
    %v325 = vld [vmem:[#allocation7] sm:$0xff]
    %v326 = vld [vmem:[#allocation7 + $0x8] sm:$0xff]
    %v327 = vld [vmem:[#allocation7 + $0x10] sm:$0xff]
    %v328 = vld [vmem:[#allocation7 + $0x18] sm:$0xff]
    %v329 = vld [vmem:[#allocation7 + $0x20] sm:$0xff]
    %v330 = vld [vmem:[#allocation7 + $0x28] sm:$0xff]
    %v331 = vld [vmem:[#allocation7 + $0x30] sm:$0xff]
    %v332 = vld [vmem:[#allocation7 + $0x38] sm:$0xff]
    %v333 = vld [vmem:[#allocation7 + $0x40] sm:$0xff]
    %v334 = vld [vmem:[#allocation7 + $0x48] sm:$0xff]
    %v335 = vld [vmem:[#allocation7 + $0x50] sm:$0xff]
    %v336 = vld [vmem:[#allocation7 + $0x58] sm:$0xff]
    %v337 = vld [vmem:[#allocation7 + $0x60] sm:$0xff]
    %v338 = vld [vmem:[#allocation7 + $0x68] sm:$0xff]
    %v339 = vld [vmem:[#allocation7 + $0x70] sm:$0xff]
    %v340 = vld [vmem:[#allocation7 + $0x78] sm:$0xff]
    %v341 = vld [vmem:[#allocation7 + $0x80] sm:$0xff]
    %v342 = vld [vmem:[#allocation7 + $0x88] sm:$0xff]
    %v343 = vld [vmem:[#allocation7 + $0x90] sm:$0xff]
    %v344 = vld [vmem:[#allocation7 + $0x98] sm:$0xff]
    %v345 = vld [vmem:[#allocation7 + $0xa0] sm:$0xff]
    %v346 = vld [vmem:[#allocation7 + $0xa8] sm:$0xff]
    %v347 = vld [vmem:[#allocation7 + $0xb0] sm:$0xff]
    %v348 = vld [vmem:[#allocation7 + $0xb8] sm:$0xff]
    %v349 = vld [vmem:[#allocation7 + $0xc0] sm:$0xff]
    %v350 = vld [vmem:[#allocation7 + $0xc8] sm:$0xff]
    %v351 = vld [vmem:[#allocation7 + $0xd0] sm:$0xff]
    %v352 = vld [vmem:[#allocation7 + $0xd8] sm:$0xff]
    %v353 = vld [vmem:[#allocation7 + $0xe0] sm:$0xff]
    %v354 = vld [vmem:[#allocation7 + $0xe8] sm:$0xff]
    %v355 = vld [vmem:[#allocation7 + $0xf0] sm:$0xff]
    %v356 = vld [vmem:[#allocation7 + $0xf8] sm:$0xff]
    %v357 = vld [vmem:[%s7] sm:$0x3]
    %v359 = vlaneseq
    %v360 = vshrl.u32 %v359, 7
    %v361 = vsub.s32 0, %v360
    %v362 = vrot.slane %v357, %v361
    %v363 = vlaneseq
    %v364 = vshrl.u32 %v363, 7
    %v365 = vsub.s32 1, %v364
    %v366 = vrot.slane %v357, %v365
    %369 = vmatprep.subr.mxu0 %v326
    %370 = vmatpush1.msra.mxu0 %v325
    %371 = vmatprep.subr.mxu0 %v328
    %372 = vmatpush1.msra.mxu0 %v327
    %373 = vmatprep.subr.mxu0 %v330
    %374 = vmatpush1.msra.mxu0 %v329
    %375 = vmatprep.subr.mxu0 %v332
    %376 = vmatpush1.msra.mxu0 %v331
    %377 = vmatprep.subr.mxu0 %v334
    %378 = vmatpush1.msra.mxu0 %v333
    %379 = vmatprep.subr.mxu0 %v336
    %380 = vmatpush1.msra.mxu0 %v335
    %381 = vmatprep.subr.mxu0 %v338
    %382 = vmatpush1.msra.mxu0 %v337
    %383 = vmatprep.subr.mxu0 %v340
    %384 = vmatpush1.msra.mxu0 %v339
    %385 = vmatprep.subr.mxu0 %v342
    %386 = vmatpush1.msra.mxu0 %v341
    %387 = vmatprep.subr.mxu0 %v344
    %388 = vmatpush1.msra.mxu0 %v343
    %389 = vmatprep.subr.mxu0 %v346
    %390 = vmatpush1.msra.mxu0 %v345
    %391 = vmatprep.subr.mxu0 %v348
    %392 = vmatpush1.msra.mxu0 %v347
    %393 = vmatprep.subr.mxu0 %v350
    %394 = vmatpush1.msra.mxu0 %v349
    %395 = vmatprep.subr.mxu0 %v352
    %396 = vmatpush1.msra.mxu0 %v351
    %397 = vmatprep.subr.mxu0 %v354
    %398 = vmatpush1.msra.mxu0 %v353
    %399 = vmatprep.subr.mxu0 %v356
    %400 = vmatpush1.msra.mxu0 %v355
    %401 = vmatprep.subr.mxu0 0.0
    %402 = vmatpush1.msra.mxu0 0.0
    %403 = vmatprep.subr.mxu0 0.0
    %404 = vmatpush1.msra.mxu0 0.0
    %405 = vmatprep.subr.mxu0 0.0
    %406 = vmatpush1.msra.mxu0 0.0
    %407 = vmatprep.subr.mxu0 0.0
    %408 = vmatpush1.msra.mxu0 0.0
    %409 = vmatprep.subr.mxu0 0.0
    %410 = vmatpush1.msra.mxu0 0.0
    %411 = vmatprep.subr.mxu0 0.0
    %412 = vmatpush1.msra.mxu0 0.0
    %413 = vmatprep.subr.mxu0 0.0
    %414 = vmatpush1.msra.mxu0 0.0
    %415 = vmatprep.subr.mxu0 0.0
    %416 = vmatpush1.msra.mxu0 0.0
    %417 = vmatprep.subr.mxu0 0.0
    %418 = vmatpush1.msra.mxu0 0.0
    %419 = vmatprep.subr.mxu0 0.0
    %420 = vmatpush1.msra.mxu0 0.0
    %421 = vmatprep.subr.mxu0 0.0
    %422 = vmatpush1.msra.mxu0 0.0
    %423 = vmatprep.subr.mxu0 0.0
    %424 = vmatpush1.msra.mxu0 0.0
    %425 = vmatprep.subr.mxu0 0.0
    %426 = vmatpush1.msra.mxu0 0.0
    %427 = vmatprep.subr.mxu0 0.0
    %428 = vmatpush1.msra.mxu0 0.0
    %429 = vmatprep.subr.mxu0 0.0
    %430 = vmatpush1.msra.mxu0 0.0
    %431 = vmatprep.subr.mxu0 0.0
    %432 = vmatpush1.msra.mxu0 0.0
    %433 = vmatprep.mubr.f32.mxu0 0.0
    %434 = vmatmul.mubr.f32.gmra.mrb[0].mxu0 %v324
    %v435 = vpop.f32.mrb[0].mxu0
    %v436 = vadd.f32 %v362, %v435
    %v437 = vpop.f32.mrb[0].mxu0
    %v438 = vadd.f32 %v366, %v437
    %439 = vdwg.mxu0
    %v440 = vmul.f32 %v438, 0.5
    %v441 = vmul.f32 %v440, 1.442695
    %v442 = vpow.pop %v441
    %v443 = vld [vmem:[%s1] sm:$0xff]
    %v444 = vmul.f32 %v442, %v443
    %v445 = vadd.f32 %v436, %v444
    %v446 = vld [vmem:[#allocation8] sm:$0xff]
    %v447 = vld [vmem:[#allocation8 + $0x8] sm:$0xff]
    %v448 = vld [vmem:[#allocation8 + $0x10] sm:$0xff]
    %v449 = vld [vmem:[#allocation8 + $0x18] sm:$0xff]
    %v450 = vld [vmem:[#allocation8 + $0x20] sm:$0xff]
    %v451 = vld [vmem:[#allocation8 + $0x28] sm:$0xff]
    %v452 = vld [vmem:[#allocation8 + $0x30] sm:$0xff]
    %v453 = vld [vmem:[#allocation8 + $0x38] sm:$0xff]
    %v454 = vld [vmem:[#allocation8 + $0x40] sm:$0xff]
    %v455 = vld [vmem:[#allocation8 + $0x48] sm:$0xff]
    %v456 = vld [vmem:[#allocation8 + $0x50] sm:$0xff]
    %v457 = vld [vmem:[#allocation8 + $0x58] sm:$0xff]
    %v458 = vld [vmem:[#allocation8 + $0x60] sm:$0xff]
    %v459 = vld [vmem:[#allocation8 + $0x68] sm:$0xff]
    %v460 = vld [vmem:[#allocation8 + $0x70] sm:$0xff]
    %v461 = vld [vmem:[#allocation8 + $0x78] sm:$0xff]
    %v462 = vld [vmem:[%s9] sm:$0x1]
    %v464 = vlaneseq
    %v465 = vshrl.u32 %v464, 7
    %v466 = vsub.s32 0, %v465
    %v467 = vrot.slane %v462, %v466
    %469 = vmatprep.subr.mxu0 0.0
    %470 = vmatpush1.msra.mxu0 %v446
    %471 = vmatprep.subr.mxu0 0.0
    %472 = vmatpush1.msra.mxu0 %v447
    %473 = vmatprep.subr.mxu0 0.0
    %474 = vmatpush1.msra.mxu0 %v448
    %475 = vmatprep.subr.mxu0 0.0
    %476 = vmatpush1.msra.mxu0 %v449
    %477 = vmatprep.subr.mxu0 0.0
    %478 = vmatpush1.msra.mxu0 %v450
    %479 = vmatprep.subr.mxu0 0.0
    %480 = vmatpush1.msra.mxu0 %v451
    %481 = vmatprep.subr.mxu0 0.0
    %482 = vmatpush1.msra.mxu0 %v452
    %483 = vmatprep.subr.mxu0 0.0
    %484 = vmatpush1.msra.mxu0 %v453
    %485 = vmatprep.subr.mxu0 0.0
    %486 = vmatpush1.msra.mxu0 %v454
    %487 = vmatprep.subr.mxu0 0.0
    %488 = vmatpush1.msra.mxu0 %v455
    %489 = vmatprep.subr.mxu0 0.0
    %490 = vmatpush1.msra.mxu0 %v456
    %491 = vmatprep.subr.mxu0 0.0
    %492 = vmatpush1.msra.mxu0 %v457
    %493 = vmatprep.subr.mxu0 0.0
    %494 = vmatpush1.msra.mxu0 %v458
    %495 = vmatprep.subr.mxu0 0.0
    %496 = vmatpush1.msra.mxu0 %v459
    %497 = vmatprep.subr.mxu0 0.0
    %498 = vmatpush1.msra.mxu0 %v460
    %499 = vmatprep.subr.mxu0 0.0
    %500 = vmatpush1.msra.mxu0 %v461
    %501 = vmatprep.subr.mxu0 0.0
    %502 = vmatpush1.msra.mxu0 0.0
    %503 = vmatprep.subr.mxu0 0.0
    %504 = vmatpush1.msra.mxu0 0.0
    %505 = vmatprep.subr.mxu0 0.0
    %506 = vmatpush1.msra.mxu0 0.0
    %507 = vmatprep.subr.mxu0 0.0
    %508 = vmatpush1.msra.mxu0 0.0
    %509 = vmatprep.subr.mxu0 0.0
    %510 = vmatpush1.msra.mxu0 0.0
    %511 = vmatprep.subr.mxu0 0.0
    %512 = vmatpush1.msra.mxu0 0.0
    %513 = vmatprep.subr.mxu0 0.0
    %514 = vmatpush1.msra.mxu0 0.0
    %515 = vmatprep.subr.mxu0 0.0
    %516 = vmatpush1.msra.mxu0 0.0
    %517 = vmatprep.subr.mxu0 0.0
    %518 = vmatpush1.msra.mxu0 0.0
    %519 = vmatprep.subr.mxu0 0.0
    %520 = vmatpush1.msra.mxu0 0.0
    %521 = vmatprep.subr.mxu0 0.0
    %522 = vmatpush1.msra.mxu0 0.0
    %523 = vmatprep.subr.mxu0 0.0
    %524 = vmatpush1.msra.mxu0 0.0
    %525 = vmatprep.subr.mxu0 0.0
    %526 = vmatpush1.msra.mxu0 0.0
    %527 = vmatprep.subr.mxu0 0.0
    %528 = vmatpush1.msra.mxu0 0.0
    %529 = vmatprep.subr.mxu0 0.0
    %530 = vmatpush1.msra.mxu0 0.0
    %531 = vmatprep.subr.mxu0 0.0
    %532 = vmatpush1.msra.mxu0 0.0
    %533 = vmatprep.mubr.f32.mxu0 0.0
    %534 = vmatmul.mubr.f32.gmra.mrb[0].mxu0 %v445
    %v535 = vpop.f32.mrb[0].mxu0
    %v536 = vadd.f32 %v467, %v535
    %v537 = vpop.f32.mrb[0].mxu0
    %538 = vdwg.mxu0
    %v539 = vmax.f32 %v536, 0.0
    %v540 = vld [vmem:[#allocation10] sm:$0xff]
    %v541 = vld [vmem:[#allocation10 + $0x8] sm:$0xff]
    %v542 = vld [vmem:[#allocation10 + $0x10] sm:$0xff]
    %v543 = vld [vmem:[#allocation10 + $0x18] sm:$0xff]
    %v544 = vld [vmem:[#allocation10 + $0x20] sm:$0xff]
    %v545 = vld [vmem:[#allocation10 + $0x28] sm:$0xff]
    %v546 = vld [vmem:[#allocation10 + $0x30] sm:$0xff]
    %v547 = vld [vmem:[#allocation10 + $0x38] sm:$0xff]
    %v548 = vld [vmem:[#allocation10 + $0x40] sm:$0xff]
    %v549 = vld [vmem:[#allocation10 + $0x48] sm:$0xff]
    %v550 = vld [vmem:[#allocation10 + $0x50] sm:$0xff]
    %v551 = vld [vmem:[#allocation10 + $0x58] sm:$0xff]
    %v552 = vld [vmem:[#allocation10 + $0x60] sm:$0xff]
    %v553 = vld [vmem:[#allocation10 + $0x68] sm:$0xff]
    %v554 = vld [vmem:[#allocation10 + $0x70] sm:$0xff]
    %v555 = vld [vmem:[#allocation10 + $0x78] sm:$0xff]
    %v556 = vld [vmem:[%s11] sm:$0x1]
    %v558 = vlaneseq
    %v559 = vshrl.u32 %v558, 7
    %v560 = vsub.s32 0, %v559
    %v561 = vrot.slane %v556, %v560
    %563 = vmatprep.subr.mxu0 0.0
    %564 = vmatpush1.msra.mxu0 %v540
    %565 = vmatprep.subr.mxu0 0.0
    %566 = vmatpush1.msra.mxu0 %v541
    %567 = vmatprep.subr.mxu0 0.0
    %568 = vmatpush1.msra.mxu0 %v542
    %569 = vmatprep.subr.mxu0 0.0
    %570 = vmatpush1.msra.mxu0 %v543
    %571 = vmatprep.subr.mxu0 0.0
    %572 = vmatpush1.msra.mxu0 %v544
    %573 = vmatprep.subr.mxu0 0.0
    %574 = vmatpush1.msra.mxu0 %v545
    %575 = vmatprep.subr.mxu0 0.0
    %576 = vmatpush1.msra.mxu0 %v546
    %577 = vmatprep.subr.mxu0 0.0
    %578 = vmatpush1.msra.mxu0 %v547
    %579 = vmatprep.subr.mxu0 0.0
    %580 = vmatpush1.msra.mxu0 %v548
    %581 = vmatprep.subr.mxu0 0.0
    %582 = vmatpush1.msra.mxu0 %v549
    %583 = vmatprep.subr.mxu0 0.0
    %584 = vmatpush1.msra.mxu0 %v550
    %585 = vmatprep.subr.mxu0 0.0
    %586 = vmatpush1.msra.mxu0 %v551
    %587 = vmatprep.subr.mxu0 0.0
    %588 = vmatpush1.msra.mxu0 %v552
    %589 = vmatprep.subr.mxu0 0.0
    %590 = vmatpush1.msra.mxu0 %v553
    %591 = vmatprep.subr.mxu0 0.0
    %592 = vmatpush1.msra.mxu0 %v554
    %593 = vmatprep.subr.mxu0 0.0
    %594 = vmatpush1.msra.mxu0 %v555
    %595 = vmatprep.subr.mxu0 0.0
    %596 = vmatpush1.msra.mxu0 0.0
    %597 = vmatprep.subr.mxu0 0.0
    %598 = vmatpush1.msra.mxu0 0.0
    %599 = vmatprep.subr.mxu0 0.0
    %600 = vmatpush1.msra.mxu0 0.0
    %601 = vmatprep.subr.mxu0 0.0
    %602 = vmatpush1.msra.mxu0 0.0
    %603 = vmatprep.subr.mxu0 0.0
    %604 = vmatpush1.msra.mxu0 0.0
    %605 = vmatprep.subr.mxu0 0.0
    %606 = vmatpush1.msra.mxu0 0.0
    %607 = vmatprep.subr.mxu0 0.0
    %608 = vmatpush1.msra.mxu0 0.0
    %609 = vmatprep.subr.mxu0 0.0
    %610 = vmatpush1.msra.mxu0 0.0
    %611 = vmatprep.subr.mxu0 0.0
    %612 = vmatpush1.msra.mxu0 0.0
    %613 = vmatprep.subr.mxu0 0.0
    %614 = vmatpush1.msra.mxu0 0.0
    %615 = vmatprep.subr.mxu0 0.0
    %616 = vmatpush1.msra.mxu0 0.0
    %617 = vmatprep.subr.mxu0 0.0
    %618 = vmatpush1.msra.mxu0 0.0
    %619 = vmatprep.subr.mxu0 0.0
    %620 = vmatpush1.msra.mxu0 0.0
    %621 = vmatprep.subr.mxu0 0.0
    %622 = vmatpush1.msra.mxu0 0.0
    %623 = vmatprep.subr.mxu0 0.0
    %624 = vmatpush1.msra.mxu0 0.0
    %625 = vmatprep.subr.mxu0 0.0
    %626 = vmatpush1.msra.mxu0 0.0
    %627 = vmatprep.mubr.f32.mxu0 0.0
    %628 = vmatmul.mubr.f32.gmra.mrb[0].mxu0 %v539
    %v629 = vpop.f32.mrb[0].mxu0
    %v630 = vadd.f32 %v561, %v629
    %v631 = vpop.f32.mrb[0].mxu0
    %632 = vdwg.mxu0
    %v633 = vmax.f32 %v630, 0.0
    %v634 = vld [vmem:[#allocation11] sm:$0xff]
    %v635 = vld [vmem:[#allocation11 + $0x8] sm:$0xff]
    %v636 = vld [vmem:[#allocation11 + $0x10] sm:$0xff]
    %v637 = vld [vmem:[#allocation11 + $0x18] sm:$0xff]
    %v638 = vld [vmem:[#allocation11 + $0x20] sm:$0xff]
    %v639 = vld [vmem:[#allocation11 + $0x28] sm:$0xff]
    %v640 = vld [vmem:[#allocation11 + $0x30] sm:$0xff]
    %v641 = vld [vmem:[#allocation11 + $0x38] sm:$0xff]
    %v642 = vld [vmem:[#allocation11 + $0x40] sm:$0xff]
    %v643 = vld [vmem:[#allocation11 + $0x48] sm:$0xff]
    %v644 = vld [vmem:[#allocation11 + $0x50] sm:$0xff]
    %v645 = vld [vmem:[#allocation11 + $0x58] sm:$0xff]
    %v646 = vld [vmem:[#allocation11 + $0x60] sm:$0xff]
    %v647 = vld [vmem:[#allocation11 + $0x68] sm:$0xff]
    %v648 = vld [vmem:[#allocation11 + $0x70] sm:$0xff]
    %v649 = vld [vmem:[#allocation11 + $0x78] sm:$0xff]
    %v650 = vld [vmem:[%s13] sm:$0x1]
    %v652 = vlaneseq
    %v653 = vshrl.u32 %v652, 7
    %v654 = vsub.s32 0, %v653
    %v655 = vrot.slane %v650, %v654
    %657 = vmatprep.subr.mxu0 0.0
    %658 = vmatpush1.msra.mxu0 %v634
    %659 = vmatprep.subr.mxu0 0.0
    %660 = vmatpush1.msra.mxu0 %v635
    %661 = vmatprep.subr.mxu0 0.0
    %662 = vmatpush1.msra.mxu0 %v636
    %663 = vmatprep.subr.mxu0 0.0
    %664 = vmatpush1.msra.mxu0 %v637
    %665 = vmatprep.subr.mxu0 0.0
    %666 = vmatpush1.msra.mxu0 %v638
    %667 = vmatprep.subr.mxu0 0.0
    %668 = vmatpush1.msra.mxu0 %v639
    %669 = vmatprep.subr.mxu0 0.0
    %670 = vmatpush1.msra.mxu0 %v640
    %671 = vmatprep.subr.mxu0 0.0
    %672 = vmatpush1.msra.mxu0 %v641
    %673 = vmatprep.subr.mxu0 0.0
    %674 = vmatpush1.msra.mxu0 %v642
    %675 = vmatprep.subr.mxu0 0.0
    %676 = vmatpush1.msra.mxu0 %v643
    %677 = vmatprep.subr.mxu0 0.0
    %678 = vmatpush1.msra.mxu0 %v644
    %679 = vmatprep.subr.mxu0 0.0
    %680 = vmatpush1.msra.mxu0 %v645
    %681 = vmatprep.subr.mxu0 0.0
    %682 = vmatpush1.msra.mxu0 %v646
    %683 = vmatprep.subr.mxu0 0.0
    %684 = vmatpush1.msra.mxu0 %v647
    %685 = vmatprep.subr.mxu0 0.0
    %686 = vmatpush1.msra.mxu0 %v648
    %687 = vmatprep.subr.mxu0 0.0
    %688 = vmatpush1.msra.mxu0 %v649
    %689 = vmatprep.subr.mxu0 0.0
    %690 = vmatpush1.msra.mxu0 0.0
    %691 = vmatprep.subr.mxu0 0.0
    %692 = vmatpush1.msra.mxu0 0.0
    %693 = vmatprep.subr.mxu0 0.0
    %694 = vmatpush1.msra.mxu0 0.0
    %695 = vmatprep.subr.mxu0 0.0
    %696 = vmatpush1.msra.mxu0 0.0
    %697 = vmatprep.subr.mxu0 0.0
    %698 = vmatpush1.msra.mxu0 0.0
    %699 = vmatprep.subr.mxu0 0.0
    %700 = vmatpush1.msra.mxu0 0.0
    %701 = vmatprep.subr.mxu0 0.0
    %702 = vmatpush1.msra.mxu0 0.0
    %703 = vmatprep.subr.mxu0 0.0
    %704 = vmatpush1.msra.mxu0 0.0
    %705 = vmatprep.subr.mxu0 0.0
    %706 = vmatpush1.msra.mxu0 0.0
    %707 = vmatprep.subr.mxu0 0.0
    %708 = vmatpush1.msra.mxu0 0.0
    %709 = vmatprep.subr.mxu0 0.0
    %710 = vmatpush1.msra.mxu0 0.0
    %711 = vmatprep.subr.mxu0 0.0
    %712 = vmatpush1.msra.mxu0 0.0
    %713 = vmatprep.subr.mxu0 0.0
    %714 = vmatpush1.msra.mxu0 0.0
    %715 = vmatprep.subr.mxu0 0.0
    %716 = vmatpush1.msra.mxu0 0.0
    %717 = vmatprep.subr.mxu0 0.0
    %718 = vmatpush1.msra.mxu0 0.0
    %719 = vmatprep.subr.mxu0 0.0
    %720 = vmatpush1.msra.mxu0 0.0
    %721 = vmatprep.mubr.f32.mxu0 0.0
    %722 = vmatmul.mubr.f32.gmra.mrb[0].mxu0 %v633
    %v723 = vpop.f32.mrb[0].mxu0
    %v724 = vadd.f32 %v655, %v723
    %v725 = vpop.f32.mrb[0].mxu0
    %726 = vdwg.mxu0
    %727 = vst [vmem:[#allocation13] sm:$0xff] %v724
    %728 = vst [vmem:[#allocation14] sm:$0xff] %v436
    %729 = vst [vmem:[#allocation16] sm:$0xff] %v438
    %730 = vst [vmem:[#allocation17] sm:$0xff] %v445
    // Predicated region
    $region82: #{vae_forward.1} parent=1 // pred_check
      _
    $region83: #{vae_forward.1} parent=1 // pred_check_branch
      %732 = sbr.rel (0) target = $region85
    $region84: #{vae_forward.1} parent=1 // pred_region
      %s734 = ssub.s32 128, 128
      %735 = vsyncadd [#allocation4], %s734
      %s737 = sshll.u32 [#allocation13], 4
      %s738 = int_to_ptr.vmem [resolvable:$true] %s737
      %740 = dma.vmem_to_hbm [thread:$0]  %s738, 128, %s14, [#allocation4]
    $region85: #{vae_forward.1} parent=1 // pred_fallthru
      _
    // Predicated region
    $region86: #{vae_forward.1} parent=1 // pred_check
      _
    $region87: #{vae_forward.1} parent=1 // pred_check_branch
      %742 = sbr.rel (0) target = $region89
    $region88: #{vae_forward.1} parent=1 // pred_region
      %s744 = ssub.s32 128, 128
      %745 = vsyncadd [#allocation15], %s744
      %s747 = sshll.u32 [#allocation14], 4
      %s748 = int_to_ptr.vmem [resolvable:$true] %s747
      %750 = dma.vmem_to_hbm [thread:$0]  %s748, 128, %s15, [#allocation15]
    $region89: #{vae_forward.1} parent=1 // pred_fallthru
      _
    // Predicated region
    $region90: #{vae_forward.1} parent=1 // pred_check
      _
    $region91: #{vae_forward.1} parent=1 // pred_check_branch
      %752 = sbr.rel (0) target = $region93
    $region92: #{vae_forward.1} parent=1 // pred_region
      %s754 = ssub.s32 128, 128
      %755 = vsyncadd [#allocation15], %s754
      %s757 = sshll.u32 [#allocation16], 4
      %s758 = int_to_ptr.vmem [resolvable:$true] %s757
      %760 = dma.vmem_to_hbm [thread:$0]  %s758, 128, %s16, [#allocation15]
    $region93: #{vae_forward.1} parent=1 // pred_fallthru
      _
    // Predicated region
    $region94: #{vae_forward.1} parent=1 // pred_check
      _
    $region95: #{vae_forward.1} parent=1 // pred_check_branch
      %762 = sbr.rel (0) target = $region97
    $region96: #{vae_forward.1} parent=1 // pred_region
      %s764 = ssub.s32 128, 128
      %765 = vsyncadd [#allocation18], %s764
      %s767 = sshll.u32 [#allocation17], 4
      %s768 = int_to_ptr.vmem [resolvable:$true] %s767
      %770 = dma.vmem_to_hbm [thread:$0]  %s768, 128, %s17, [#allocation18]
    $region97: #{vae_forward.1} parent=1 // pred_fallthru
      _
    // Predicated region
    $region98: #{vae_forward.1} parent=1 // pred_check
      _
    $region99: #{vae_forward.1} parent=1 // pred_check_branch
      %772 = sbr.rel (0) target = $region101
    $region100: #{vae_forward.1} parent=1 // pred_region
      %773 = dma.done [#allocation4], 128
    $region101: #{vae_forward.1} parent=1 // pred_fallthru
      _
    // Predicated region
    $region102: #{vae_forward.1} parent=1 // pred_check
      _
    $region103: #{vae_forward.1} parent=1 // pred_check_branch
      %775 = sbr.rel (0) target = $region105
    $region104: #{vae_forward.1} parent=1 // pred_region
      %776 = dma.done [#allocation15], 128
    $region105: #{vae_forward.1} parent=1 // pred_fallthru
      _
    // Predicated region
    $region106: #{vae_forward.1} parent=1 // pred_check
      _
    $region107: #{vae_forward.1} parent=1 // pred_check_branch
      %778 = sbr.rel (0) target = $region109
    $region108: #{vae_forward.1} parent=1 // pred_region
      %779 = dma.done [#allocation15], 128
    $region109: #{vae_forward.1} parent=1 // pred_fallthru
      _
    // Predicated region
    $region110: #{vae_forward.1} parent=1 // pred_check
      _
    $region111: #{vae_forward.1} parent=1 // pred_check_branch
      %781 = sbr.rel (0) target = $region113
    $region112: #{vae_forward.1} parent=1 // pred_region
      %782 = dma.done [#allocation18], 128
    $region113: #{vae_forward.1} parent=1 // pred_fallthru
      _
    %783 = vsyncpa [#allocation3], 1
    %784 = vsyncpa [#allocation6], 1
    %785 = vsyncpa [#allocation9], 1
    %786 = vsyncpa [#allocation12], 1
    %787 = vsyncpa [#allocation4], 1
    %788 = vsyncpa [#allocation15], 1
    %789 = vsyncpa [#allocation18], 1

</llo_original>
